<compile_context>
chip_gen: v6e
topology: v6e:2x2x1
jax: 0.10.0
libtpu: 0.0.40
codegen_flags: <defaults>
</compile_context>

<pallas_src>
from typing import NamedTuple, Optional

import jax
import jax.numpy as jnp
from jax.experimental import pallas as pl
from jax.experimental.pallas import tpu as pltpu


# ----------------------------------------------------------------------------- kernels
def _logreg_kernel_resident(x_ref, w_ref, b_ref, o_ref):
    # x_ref: (tm, C_in); w_ref: (C_in, C_out_pad) resident; b_ref: (1, C_out_pad)
    acc = jnp.dot(x_ref[...], w_ref[...], preferred_element_type=jnp.float32)
    o_ref[...] = (acc + b_ref[...]).astype(o_ref.dtype)


def _logreg_kernel_ktiled(x_ref, w_ref, b_ref, o_ref, acc_ref):
    # Reduction over the K (C_in) grid axis; f32 accumulator in VMEM scratch.
    k = pl.program_id(1)

    @pl.when(k == 0)
    def _():
        acc_ref[...] = jnp.zeros_like(acc_ref)

    acc_ref[...] += jnp.dot(x_ref[...], w_ref[...],
                            preferred_element_type=jnp.float32)

    @pl.when(k == pl.num_programs(1) - 1)
    def _():
        o_ref[...] = (acc_ref[...] + b_ref[...]).astype(o_ref.dtype)


# ----------------------------------------------------------------------------- helpers
def _round_up(a, b):
    return ((a + b - 1) // b) * b


def _vmem_budget_bytes():
    """Per-core VMEM budget: ~3/4 of physical (48 MiB on v7x, 96 MiB v5e/v6e)."""
    cap = 64 * 1024 * 1024  # conservative default = v7x per-TC VMEM
    try:
        info = pltpu.get_tpu_info()
        cap = int(getattr(info, "vmem_capacity_bytes", cap))
    except Exception:
        pass
    return int(cap * 3 // 4)


def _pick_tm(n, sub, budget, fixed_bytes, per_row_bytes):
    """Largest row tile (multiple of `sub`) that keeps the pipeline in budget."""
    if n <= sub:
        return n  # single block, second-to-last dim == full array dim
    tm = (budget - fixed_bytes) // max(per_row_bytes, 1)
    tm = min(tm // sub * sub, 1024, max(sub, n // sub * sub))
    return max(tm, sub)


class LogRegParams(NamedTuple):
    w: jax.Array      # (k_tiles * tk, c_out_pad)  == padded W^T
    b: jax.Array      # (1, c_out_pad) f32
    c_in: int
    c_out: int
    c_out_pad: int
    tk: int
    k_tiles: int
    resident: bool
    budget: int


def prepare_logreg_params(weight, bias, *, param_dtype=None,
                          vmem_budget_bytes: Optional[int] = None,
                          force_k_tiles: Optional[int] = None) -> LogRegParams:
    """One-time prep: transpose + pad weight, pick resident vs K-tiled plan.

    weight: (C_out, C_in) PyTorch layout; bias: (C_out,).
    """
    c_out, c_in = weight.shape
    if param_dtype is not None:
        weight = weight.astype(param_dtype)
    w_it = weight.dtype.itemsize
    budget = int(vmem_budget_bytes) if vmem_budget_bytes else _vmem_budget_bytes()

    # Lane-dense output only when the extra writeback is bounded (<= 25%).
    c_out_128 = _round_up(c_out, 128)
    c_out_pad = c_out_128 if (c_out_128 - c_out) * 4 <= c_out else c_out

    w_bytes = c_in * c_out_pad * w_it
    if force_k_tiles is None:
        resident = w_bytes <= budget // 2
    else:
        resident = force_k_tiles <= 1

    if resident:
        tk, k_tiles = c_in, 1
    else:
        if force_k_tiles is not None:
            tk = _round_up(pl.cdiv(c_in, max(2, force_k_tiles)), 128)
        else:
            # Double-buffered weight slab gets ~1/3 of the budget.
            tk = max(128, (budget // 3) // (2 * c_out_pad * w_it) // 128 * 128)
        tk = min(tk, _round_up(c_in, 128))
        k_tiles = pl.cdiv(c_in, tk)
    c_in_pad = tk * k_tiles

    w_t = jnp.zeros((c_in_pad, c_out_pad), weight.dtype).at[:c_in, :c_out].set(weight.T)
    b_p = jnp.zeros((1, c_out_pad), jnp.float32).at[0, :c_out].set(
        bias.astype(jnp.float32))
    return LogRegParams(w_t, b_p, c_in, c_out, c_out_pad, tk, k_tiles,
                        resident, budget)


# ----------------------------------------------------------------------------- forward
def logreg_forward(x, params: LogRegParams):
    """x: (N, C_in) in the compute dtype (f32 or bf16). Returns (N, C_out) in x.dtype."""
    n, c_in = x.shape
    assert c_in == params.c_in, "x feature dim does not match prepared weight"
    x_it = x.dtype.itemsize
    out_dtype = x.dtype
    out_it = jnp.dtype(out_dtype).itemsize
    c_out_pad = params.c_out_pad
    budget = params.budget
    sub = max(8, 32 // x_it)  # sublane multiple: 8 f32, 16 bf16, 32 int8

    cost = pl.CostEstimate(
        flops=int(2 * n * params.c_in * c_out_pad),
        transcendentals=0,
        bytes_accessed=int(x.size * x_it
                           + params.w.size * params.w.dtype.itemsize
                           + params.b.size * 4
                           + n * c_out_pad * out_it),
    )

    if params.resident:
        # Weight + bias stay VMEM-resident (single-buffered); x/out row-tiled.
        fixed = params.w.size * params.w.dtype.itemsize + params.b.size * 4
        per_row = 2 * c_in * x_it + 2 * c_out_pad * out_it
        tm = _pick_tm(n, sub, budget, fixed, per_row)

        out = pl.pallas_call(
            _logreg_kernel_resident,
            out_shape=jax.ShapeDtypeStruct((n, c_out_pad), out_dtype),
            grid_spec=pltpu.PrefetchScalarGridSpec(
                num_scalar_prefetch=0,
                grid=(pl.cdiv(n, tm),),
                in_specs=[
                    pl.BlockSpec((tm, c_in), lambda i: (i, 0)),
                    pl.BlockSpec((c_in, c_out_pad), lambda i: (0, 0),
                                 pipeline_mode=pl.Buffered(1)),
                    pl.BlockSpec((1, c_out_pad), lambda i: (0, 0),
                                 pipeline_mode=pl.Buffered(1)),
                ],
                out_specs=pl.BlockSpec((tm, c_out_pad), lambda i: (i, 0)),
            ),
            compiler_params=pltpu.CompilerParams(
                dimension_semantics=("parallel",),
                vmem_limit_bytes=int(budget),
            ),
            cost_estimate=cost,
        )(x, params.w, params.b)
    else:
        # Weight too big to stay resident: stream K slabs, accumulate in f32 VMEM.
        tk, k_tiles = params.tk, params.k_tiles
        c_in_pad = tk * k_tiles
        if c_in_pad != c_in:
            # Zero-pad K so boundary blocks never mix garbage into the reduction.
            x = jnp.zeros((n, c_in_pad), x.dtype).at[:, :c_in].set(x)

        fixed = 2 * tk * c_out_pad * params.w.dtype.itemsize + params.b.size * 4
        per_row = 2 * tk * x_it + 2 * c_out_pad * out_it + c_out_pad * 4
        tm = _pick_tm(n, sub, budget, fixed, per_row)

        out = pl.pallas_call(
            _logreg_kernel_ktiled,
            out_shape=jax.ShapeDtypeStruct((n, c_out_pad), out_dtype),
            grid_spec=pltpu.PrefetchScalarGridSpec(
                num_scalar_prefetch=0,
                grid=(pl.cdiv(n, tm), k_tiles),
                in_specs=[
                    pl.BlockSpec((tm, tk), lambda i, k: (i, k)),
                    pl.BlockSpec((tk, c_out_pad), lambda i, k: (k, 0)),
                    pl.BlockSpec((1, c_out_pad), lambda i, k: (0, 0),
                                 pipeline_mode=pl.Buffered(1)),
                ],
                out_specs=pl.BlockSpec((tm, c_out_pad), lambda i, k: (i, 0)),
                scratch_shapes=[pltpu.VMEM((tm, c_out_pad), jnp.float32)],
            ),
            compiler_params=pltpu.CompilerParams(
                dimension_semantics=("parallel", "arbitrary"),
                vmem_limit_bytes=int(budget),
            ),
            cost_estimate=cost,
        )(x, params.w, params.b)

    if c_out_pad != params.c_out:
        out = out[:, :params.c_out]
    return out


# ----------------------------------------------------------------------------- init
def xavier_uniform(key, shape, dtype=jnp.float32):
    # torch.nn.init.xavier_uniform_: U(-a, a), a = sqrt(6 / (fan_in + fan_out))
    fan_out, fan_in = shape  # PyTorch Linear weight is (out_features, in_features)
    a = (6.0 / (fan_in + fan_out)) ** 0.5
    return jax.random.uniform(key, shape, dtype, minval=-a, maxval=a)


if __name__ == "__main__":
    key = jax.random.PRNGKey(0)
    k_x, k_w, k_b, k_x2, k_w2, k_b2 = jax.random.split(key, 6)

    # Shapes implied by the module: small batch of feature vectors.
    batch, in_channels, num_classes = 8, 32, 8
    x = jax.random.normal(k_x, (batch, in_channels), dtype=jnp.float32)
    weight = xavier_uniform(k_w, (num_classes, in_channels))          # xavier_uniform_
    bound = 1.0 / (in_channels ** 0.5)                                 # nn.Linear default bias init
    bias = jax.random.uniform(k_b, (num_classes,), jnp.float32,
                              minval=-bound, maxval=bound)
    ref = x @ weight.T + bias

    # --- f32 path (VMEM-resident weight, single-buffered) --------------------
    params = prepare_logreg_params(weight, bias)
    out = jax.block_until_ready(logreg_forward(x, params))
    assert out.shape == (batch, num_classes)
    assert jnp.allclose(out, ref, atol=1e-5, rtol=1e-5)

    # --- bf16 path (caller-supplied bf16 x/W, f32 accumulate, bf16 output) ---
    params_bf16 = prepare_logreg_params(weight, bias, param_dtype=jnp.bfloat16)
    out_bf16 = jax.block_until_ready(logreg_forward(x.astype(jnp.bfloat16), params_bf16))
    assert out_bf16.dtype == jnp.bfloat16
    assert jnp.allclose(out_bf16.astype(jnp.float32), ref, atol=5e-2, rtol=5e-2)

    # --- forced K-tiled path (exercises the reduction/accumulator kernel) ----
    n2, c_in2, c_out2 = 16, 256, 8
    x2 = jax.random.normal(k_x2, (n2, c_in2), dtype=jnp.float32)
    w2 = xavier_uniform(k_w2, (c_out2, c_in2))
    b2 = jax.random.uniform(k_b2, (c_out2,), jnp.float32, minval=-0.1, maxval=0.1)
    params2 = prepare_logreg_params(w2, b2, force_k_tiles=2)
    out2 = jax.block_until_ready(logreg_forward(x2, params2))
    ref2 = x2 @ w2.T + b2
    assert jnp.allclose(out2, ref2, atol=1e-4, rtol=1e-4)

    print("KERNEL_OK")
</pallas_src>

<mosaic_0001>
module attributes {stable_mosaic.version = 11 : i64} {
  func.func @_logreg_kernel_resident(%arg0: i32, %arg1: memref<8x32xf32, #tpu.memory_space<vmem>>, %arg2: memref<32x8xf32, #tpu.memory_space<vmem>>, %arg3: memref<1x8xf32, #tpu.memory_space<vmem>>, %arg4: memref<8x8xf32, #tpu.memory_space<vmem>>) attributes {dimension_semantics = [#tpu.dimension_semantics<parallel>], iteration_bounds = array<i64: 1>, scalar_prefetch = 0 : i64, scratch_operands = 0 : i64, tpu.core_type = #tpu.core_type<tc>, window_params = [{transform_indices = @transform_0, window_bounds = array<i64: 8, 32>}, {pipeline_mode = #tpu.pipeline_mode<synchronous>, transform_indices = @transform_1, window_bounds = array<i64: 32, 8>}, {pipeline_mode = #tpu.pipeline_mode<synchronous>, transform_indices = @transform_2, window_bounds = array<i64: 1, 8>}, {transform_indices = @transform_3, window_bounds = array<i64: 8, 8>}]} {
    %c0 = arith.constant 0 : index
    %c0_0 = arith.constant 0 : index
    %0 = vector.load %arg1[%c0, %c0_0] : memref<8x32xf32, #tpu.memory_space<vmem>>, vector<8x32xf32>
    %c0_1 = arith.constant 0 : index
    %c0_2 = arith.constant 0 : index
    %1 = vector.load %arg2[%c0_1, %c0_2] : memref<32x8xf32, #tpu.memory_space<vmem>>, vector<32x8xf32>
    %cst = arith.constant dense<0.000000e+00> : vector<8x8xf32>
    %2 = tpu.matmul %0, %1, %cst {dimension_numbers = #tpu.dot_dimension_numbers<[1], [0], [0], [1], [0, 0, 1, 1], [], []>} : vector<8x32xf32>, vector<32x8xf32>, vector<8x8xf32> -> vector<8x8xf32>
    %c0_3 = arith.constant 0 : index
    %c0_4 = arith.constant 0 : index
    %3 = vector.load %arg3[%c0_3, %c0_4] : memref<1x8xf32, #tpu.memory_space<vmem>>, vector<1x8xf32>
    %4 = vector.broadcast %3 : vector<1x8xf32> to vector<8x8xf32>
    %5 = arith.addf %2, %4 : vector<8x8xf32>
    %c0_5 = arith.constant 0 : index
    %c0_6 = arith.constant 0 : index
    %6 = vector.load %arg4[%c0_5, %c0_6] : memref<8x8xf32, #tpu.memory_space<vmem>>, vector<8x8xf32>
    tpu.vector_store %arg4[%c0_5, %c0_6], %5 {strides = array<i32>} : memref<8x8xf32, #tpu.memory_space<vmem>>, vector<8x8xf32>,
    return
  }
  func.func @transform_0(%arg0: i32) -> (i32, i32) {
    %c0_i32 = arith.constant 0 : i32
    %c0_i32_0 = arith.constant 0 : i32
    return %arg0, %c0_i32 : i32, i32
  }
  func.func @transform_1(%arg0: i32) -> (i32, i32) {
    %c0_i32 = arith.constant 0 : i32
    %c0_i32_0 = arith.constant 0 : i32
    %c0_i32_1 = arith.constant 0 : i32
    return %c0_i32, %c0_i32_0 : i32, i32
  }
  func.func @transform_2(%arg0: i32) -> (i32, i32) {
    %c0_i32 = arith.constant 0 : i32
    %c0_i32_0 = arith.constant 0 : i32
    %c0_i32_1 = arith.constant 0 : i32
    return %c0_i32, %c0_i32_0 : i32, i32
  }
  func.func @transform_3(%arg0: i32) -> (i32, i32) {
    %c0_i32 = arith.constant 0 : i32
    %c0_i32_0 = arith.constant 0 : i32
    return %arg0, %c0_i32 : i32, i32
  }
}

</mosaic_0001>

<llo_original>
// kernel: tpu_custom_call.1
$region0: #{tpu_custom_call.1}
  #allocation0 [shape = 'u32[]', space=smem, size = 0x4, offset = 0x4, fixed_abs, tag = 'smem constant byte address 0x4 - core index']
  #allocation1 [shape = 'u32[144,128]{1,0:T(1,128)}', space=vmem, size = 0x12000, scoped, tag = 'internal scratch']
  %s0 = inlined_call_operand.vmem [shape: f32[8,32], index: 0, kind: input, shape index: {}]
  %s1 = inlined_call_operand.vmem [shape: f32[32,8], index: 1, kind: input, shape index: {}]
  %s2 = inlined_call_operand.vmem [shape: f32[1,8], index: 2, kind: input, shape index: {}]
  %s3 = inlined_call_operand.hbm [shape: f32[8,8], index: 3, kind: output, shape index: {}]
  %s4 = sld [smem:[#allocation0]]
  $region22: #{tpu_custom_call.1} parent=0
    _
  %s6 = ssub.s32 1, %s4
  %s7 = scalar_select 0, %s6, %s4
  $region1: #{tpu_custom_call.1} parent=0
    #allocation2 [shape = 'u8[4096]{0}', space=vmem, size = 0x1000, scoped, tag = 'output window, operand 0, single buffered']
    #allocation3 [shape = 's32[1]{0}', space=sflag, size = 0x4, scoped, tag = 'scoped memory for tpu_custom_call.1']
    %8 = vsyncpa [#allocation3], 0
    // Predicated region
    $region2: #{tpu_custom_call.1} parent=1 // pred_check
      _
    $region3: #{tpu_custom_call.1} parent=1 // pred_check_branch
      %10 = sbr.rel (0) target = $region5
    $region4: #{tpu_custom_call.1} parent=1 // pred_region
      _
    $region5: #{tpu_custom_call.1} parent=1 // pred_fallthru
      _
    // Predicated region
    $region6: #{tpu_custom_call.1} parent=1 // pred_check
      _
    $region7: #{tpu_custom_call.1} parent=1 // pred_check_branch
      %12 = sbr.rel (0) target = $region9
    $region8: #{tpu_custom_call.1} parent=1 // pred_region
      _
    $region9: #{tpu_custom_call.1} parent=1 // pred_fallthru
      _
    // Predicated region
    $region10: #{tpu_custom_call.1} parent=1 // pred_check
      _
    $region11: #{tpu_custom_call.1} parent=1 // pred_check_branch
      %14 = sbr.rel (0) target = $region13
    $region12: #{tpu_custom_call.1} parent=1 // pred_region
      _
    $region13: #{tpu_custom_call.1} parent=1 // pred_fallthru
      _
    %v15 = vld [vmem:[%s0] sm:$0xff]
    %v16 = vld [vmem:[%s1] sm:$0xff]
    %v17 = vld [vmem:[%s1 + $0x8] sm:$0xff]
    %v18 = vld [vmem:[%s1 + $0x10] sm:$0xff]
    %v19 = vld [vmem:[%s1 + $0x18] sm:$0xff]
    %v20 = vld [vmem:[%s2] sm:$0x1]
    %v22 = vlaneseq
    %v23 = vshrl.u32 %v22, 7
    %v24 = vsub.s32 0, %v23
    %v25 = vrot.slane %v20, %v24
    %vm27 = vcmask 261120
    %v29 = vsel %vm27, %v15, 0
    %31 = vmatprep.subr.mxu0 0.0
    %32 = vmatpush1.msra.mxu0 0.0
    %33 = vmatprep.subr.mxu0 0.0
    %34 = vmatpush1.msra.mxu0 0.0
    %35 = vmatprep.subr.mxu0 0.0
    %36 = vmatpush1.msra.mxu0 0.0
    %37 = vmatprep.subr.mxu0 0.0
    %38 = vmatpush1.msra.mxu0 0.0
    %39 = vmatprep.subr.mxu0 0.0
    %40 = vmatpush1.msra.mxu0 0.0
    %41 = vmatprep.subr.mxu0 0.0
    %42 = vmatpush1.msra.mxu0 0.0
    %43 = vmatprep.subr.mxu0 0.0
    %44 = vmatpush1.msra.mxu0 0.0
    %45 = vmatprep.subr.mxu0 0.0
    %46 = vmatpush1.msra.mxu0 0.0
    %47 = vmatprep.subr.mxu0 0.0
    %48 = vmatpush1.msra.mxu0 0.0
    %49 = vmatprep.subr.mxu0 0.0
    %50 = vmatpush1.msra.mxu0 0.0
    %51 = vmatprep.subr.mxu0 0.0
    %52 = vmatpush1.msra.mxu0 0.0
    %53 = vmatprep.subr.mxu0 0.0
    %54 = vmatpush1.msra.mxu0 0.0
    %55 = vmatprep.subr.mxu0 0.0
    %56 = vmatpush1.msra.mxu0 %v19
    %57 = vmatprep.subr.mxu0 0.0
    %58 = vmatpush1.msra.mxu0 %v18
    %59 = vmatprep.subr.mxu0 0.0
    %60 = vmatpush1.msra.mxu0 %v17
    %61 = vmatprep.subr.mxu0 0.0
    %62 = vmatpush1.msra.mxu0 %v16
    %63 = vmatprep.subr.mxu0 0.0
    %64 = vmatpush2.msra.mxu0 0.0
    %65 = vmatprep.subr.mxu0 0.0
    %66 = vmatpush2.msra.mxu0 0.0
    %67 = vmatprep.subr.mxu0 0.0
    %68 = vmatpush2.msra.mxu0 0.0
    %69 = vmatprep.subr.mxu0 0.0
    %70 = vmatpush2.msra.mxu0 0.0
    %71 = vmatprep.subr.mxu0 0.0
    %72 = vmatpush2.msra.mxu0 0.0
    %73 = vmatprep.subr.mxu0 0.0
    %74 = vmatpush2.msra.mxu0 0.0
    %75 = vmatprep.subr.mxu0 0.0
    %76 = vmatpush2.msra.mxu0 0.0
    %77 = vmatprep.subr.mxu0 0.0
    %78 = vmatpush2.msra.mxu0 0.0
    %79 = vmatprep.subr.mxu0 0.0
    %80 = vmatpush2.msra.mxu0 0.0
    %81 = vmatprep.subr.mxu0 0.0
    %82 = vmatpush2.msra.mxu0 0.0
    %83 = vmatprep.subr.mxu0 0.0
    %84 = vmatpush2.msra.mxu0 0.0
    %85 = vmatprep.subr.mxu0 0.0
    %86 = vmatpush2.msra.mxu0 0.0
    %87 = vmatprep.subr.mxu0 0.0
    %88 = vmatpush2.msra.mxu0 0.0
    %89 = vmatprep.subr.mxu0 0.0
    %90 = vmatpush2.msra.mxu0 0.0
    %91 = vmatprep.subr.mxu0 0.0
    %92 = vmatpush2.msra.mxu0 0.0
    %93 = vmatprep.subr.mxu0 0.0
    %94 = vmatpush2.msra.mxu0 0.0
    %95 = vmatprep.mubr.f32.mxu0 0.0
    %96 = vmatmul.mubr.f32.gmra.mxu0 %v29
    %v97 = vpop.f32.mrf.mxu0
    %v98 = vadd.f32 %v25, %v97
    %v99 = vpop.f32.mrf.mxu0
    %100 = vdwg.mxu0
    %vm101 = vcmask 64512
    %102 = vst.msk [vmem:[#allocation2] sm:$0xff] %vm101, %v98
    // Predicated region
    $region14: #{tpu_custom_call.1} parent=1 // pred_check
      _
    $region15: #{tpu_custom_call.1} parent=1 // pred_check_branch
      %104 = sbr.rel (0) target = $region17
    $region16: #{tpu_custom_call.1} parent=1 // pred_region
      %s106 = ssub.s32 128, 128
      %107 = vsyncadd [#allocation3], %s106
      %s109 = sshll.u32 [#allocation2], 4
      %s110 = int_to_ptr.vmem [resolvable:$true] %s109
      %112 = dma.vmem_to_hbm [thread:$0]  %s110, 128, %s3, [#allocation3]
    $region17: #{tpu_custom_call.1} parent=1 // pred_fallthru
      _
    // Predicated region
    $region18: #{tpu_custom_call.1} parent=1 // pred_check
      _
    $region19: #{tpu_custom_call.1} parent=1 // pred_check_branch
      %114 = sbr.rel (0) target = $region21
    $region20: #{tpu_custom_call.1} parent=1 // pred_region
      %115 = dma.done [#allocation3], 128
    $region21: #{tpu_custom_call.1} parent=1 // pred_fallthru
      _
    %116 = vsyncpa [#allocation3], 1

</llo_original>
